<compile_context>
chip_gen: v5e
topology: v5e:2x2
jax: 0.10.0
libtpu: 0.0.40
codegen_flags: <defaults>
</compile_context>

<pallas_src>
import functools
import math

import jax
import jax.numpy as jnp
from jax import lax
from jax.experimental import pallas as pl
from jax.experimental.pallas import tpu as pltpu


def _self_attn_kernel(q_ref, kv_ref, o_ref, m_ref, l_ref, acc_ref, qs_ref,
                      *, inv_sqrt_c, exp_dtype):
    # q_ref : (1, C, TQ) query tile (channel-major), resident across ki
    # kv_ref: (1, C, TK) key/value tile (same tensor, different N-slice)
    # o_ref : (1, C, TQ) output tile (resident across the kv grid axis)
    # m_ref, l_ref: (1, TQ) running max / denom (f32)
    # acc_ref: (C, TQ) f32 output accumulator
    # qs_ref : (C, TQ) scaled query tile (hoisted out of the ki loop)
    ki = pl.program_id(2)

    @pl.when(ki == 0)
    def _init():
        m_ref[...] = jnp.full(m_ref.shape, -jnp.inf, jnp.float32)
        l_ref[...] = jnp.zeros(l_ref.shape, jnp.float32)
        acc_ref[...] = jnp.zeros(acc_ref.shape, jnp.float32)
        q0 = q_ref[0]
        # Fold 1/sqrt(C) into the query tile once per (b, qi) instead of
        # re-multiplying C*TQ elements on every kv step.
        qs_ref[...] = (q0 * jnp.asarray(inv_sqrt_c, dtype=q0.dtype)).astype(qs_ref.dtype)

    qs = qs_ref[...]                          # (C, TQ), native MXU dtype
    kv = kv_ref[0].astype(qs_ref.dtype)       # (C, TK)

    # Transposed scores: s_t[k, q'] = <kv[:, k], qs[:, q']>  -> (TK, TQ).
    # Keeping the query index on lanes means all softmax stats are (1, TQ)
    # and broadcast over sublanes for free.
    s_t = lax.dot_general(
        kv, qs,
        dimension_numbers=(((0,), (0,)), ((), ())),
        preferred_element_type=jnp.float32,
    )

    m_prev = m_ref[...]                                           # (1, TQ)
    m_new = jnp.maximum(m_prev, jnp.max(s_t, axis=0, keepdims=True))
    alpha = jnp.exp(m_prev - m_new)                               # (1, TQ)
    # bf16 exponent only when the input is bf16 (v6e/v7x EUP relief); f32
    # inputs keep f32 exp so we stay within tolerance of the f32 reference.
    p_t = jnp.exp((s_t - m_new).astype(exp_dtype))                # (TK, TQ)

    l_ref[...] = alpha * l_ref[...] + jnp.sum(
        p_t, axis=0, keepdims=True, dtype=jnp.float32)

    # o_part[c, q'] = sum_k kv[c, k] * p_t[k, q']  -> (C, TQ)
    o_part = lax.dot_general(
        kv, p_t.astype(kv.dtype),
        dimension_numbers=(((1,), (0,)), ((), ())),
        preferred_element_type=jnp.float32,
    )
    acc_ref[...] = alpha * acc_ref[...] + o_part
    m_ref[...] = m_new

    @pl.when(ki == pl.num_programs(2) - 1)
    def _finalize():
        # Exact division (approx reciprocal previously blew the tolerance);
        # this runs once per q tile so the cost is negligible.
        out = acc_ref[...] / l_ref[...] + q_ref[0].astype(jnp.float32)
        o_ref[0] = out.astype(o_ref.dtype)


def _tpu_vmem_bytes():
    try:
        return int(pltpu.get_tpu_info().vmem_capacity_bytes)
    except Exception:
        return 64 * 1024 * 1024          # conservative default (v7x per-core)


def _tile_candidates(n):
    cands = [t for t in range(128, n + 1, 128) if n % t == 0]
    return cands if cands else [n]


def _vmem_bytes_estimate(c, tq, tk, itemsize):
    tiles = 2 * c * (2 * tq + tk) * itemsize          # double-buffered q/kv/out tiles
    scratch = c * tq * (4 + itemsize) + 2 * 4 * tq     # acc(f32) + qs + m/l
    interm = 2 * tk * tq * 4 + c * tq * 4              # s_t + p_t + o_part (f32)
    return tiles + scratch + interm


def _pick_tiles(n, c, itemsize, budget):
    cands = _tile_candidates(n)
    # TQ ~ 256: bounds the f32 (TK, TQ) temporaries (and v5e vst traffic);
    # the main lever is growing TK toward N.
    if 256 in cands:
        tq = 256
    else:
        small = [t for t in cands if t <= 512]
        tq = max(small) if small else min(cands)
    # TK: largest candidate (ideally N -> single softmax pass, no KV
    # re-streaming) whose working set fits the VMEM budget.
    tk = None
    for t in sorted(cands, reverse=True):
        if _vmem_bytes_estimate(c, tq, t, itemsize) <= budget:
            tk = t
            break
    if tk is None:
        tk = min(cands)
        while _vmem_bytes_estimate(c, tq, tk, itemsize) > budget:
            smaller = [t for t in cands if t < tq]
            if not smaller:
                break
            tq = max(smaller)
    return tq, tk


def self_attn(x, *, tile_q=None, tile_k=None):
    """x: (B, C, H, W) -> (B, C, H, W), matching PyTorch SelfAttn.forward."""
    B, C, H, W = x.shape
    N = H * W
    inv_sqrt_c = 1.0 / math.sqrt(C)
    itemsize = jnp.dtype(x.dtype).itemsize

    # Channel-major (B, C, N): pure reshape, no HBM transpose.
    x_cn = x.reshape(B, C, N)

    vmem_cap = _tpu_vmem_bytes()
    budget = int(vmem_cap * 0.55)

    auto_tq, auto_tk = _pick_tiles(N, C, itemsize, budget)
    TQ = tile_q if tile_q is not None else auto_tq
    TK = tile_k if tile_k is not None else auto_tk
    assert N % TQ == 0, f"tile_q={TQ} must divide N={N}"
    assert N % TK == 0, f"tile_k={TK} must divide N={N}"

    # Megacore (v7x has 2 TensorCores): keep the parallel grid extent >= 2
    # when possible by shrinking TQ one notch if B * (N // TQ) == 1.
    if tile_q is None and B * (N // TQ) < 2:
        smaller = [t for t in _tile_candidates(N) if t < TQ]
        if smaller:
            TQ = max(smaller)

    exp_dtype = jnp.bfloat16 if x.dtype == jnp.bfloat16 else jnp.float32

    est = _vmem_bytes_estimate(C, TQ, TK, itemsize)
    vmem_limit = int(min(max(32 * 1024 * 1024, 2 * est), 0.75 * vmem_cap))

    kernel = functools.partial(
        _self_attn_kernel, inv_sqrt_c=inv_sqrt_c, exp_dtype=exp_dtype)

    out = pl.pallas_call(
        kernel,
        out_shape=jax.ShapeDtypeStruct((B, C, N), x.dtype),
        grid_spec=pltpu.PrefetchScalarGridSpec(
            num_scalar_prefetch=0,
            grid=(B, N // TQ, N // TK),
            in_specs=[
                pl.BlockSpec((1, C, TQ), lambda b, qi, ki: (b, 0, qi)),  # queries
                pl.BlockSpec((1, C, TK), lambda b, qi, ki: (b, 0, ki)),  # keys/values
            ],
            out_specs=pl.BlockSpec((1, C, TQ), lambda b, qi, ki: (b, 0, qi)),
            scratch_shapes=[
                pltpu.VMEM((1, TQ), jnp.float32),   # running max
                pltpu.VMEM((1, TQ), jnp.float32),   # running denom
                pltpu.VMEM((C, TQ), jnp.float32),   # f32 output accumulator
                pltpu.VMEM((C, TQ), x.dtype),       # hoisted scaled-query tile
            ],
        ),
        compiler_params=pltpu.CompilerParams(
            dimension_semantics=("parallel", "parallel", "arbitrary"),
            vmem_limit_bytes=vmem_limit,
        ),
    )(x_cn, x_cn)

    return out.reshape(B, C, H, W)


def _reference(x):
    B, C, H, W = x.shape
    N = H * W
    q = jnp.transpose(x.reshape(B, C, N), (0, 2, 1)).astype(jnp.float32)
    s = jnp.einsum("bnc,bmc->bnm", q, q) / math.sqrt(C)
    attn = jax.nn.softmax(s, axis=-1)
    out = jnp.einsum("bnm,bmc->bnc", attn, q)
    out = jnp.transpose(out, (0, 2, 1)).reshape(B, C, H, W)
    return (out + x.astype(jnp.float32)).astype(x.dtype)


if __name__ == "__main__":
    key = jax.random.PRNGKey(0)
    B, C, H, W = 2, 4, 16, 16
    x = jax.random.normal(key, (B, C, H, W), dtype=jnp.float32)

    y = self_attn(x)
    jax.block_until_ready(y)

    y_ref = _reference(x)
    assert y.shape == (B, C, H, W)
    err = float(jnp.max(jnp.abs(y.astype(jnp.float32) - y_ref.astype(jnp.float32))))
    assert err < 2e-3, f"mismatch vs reference: max abs err {err}"

    print("KERNEL_OK")
</pallas_src>

<mosaic_0001>
module attributes {stable_mosaic.version = 11 : i64} {
  func.func @_self_attn_kernel(%arg0: i32, %arg1: i32, %arg2: i32, %arg3: memref<1x4x256xf32, #tpu.memory_space<vmem>>, %arg4: memref<1x4x256xf32, #tpu.memory_space<vmem>>, %arg5: memref<1x4x256xf32, #tpu.memory_space<vmem>>, %arg6: memref<1x256xf32, #tpu.memory_space<vmem>>, %arg7: memref<1x256xf32, #tpu.memory_space<vmem>>, %arg8: memref<4x256xf32, #tpu.memory_space<vmem>>, %arg9: memref<4x256xf32, #tpu.memory_space<vmem>>) attributes {dimension_semantics = [#tpu.dimension_semantics<parallel>, #tpu.dimension_semantics<parallel>, #tpu.dimension_semantics<arbitrary>], iteration_bounds = array<i64: 2, 1, 1>, scalar_prefetch = 0 : i64, scratch_operands = 4 : i64, tpu.core_type = #tpu.core_type<tc>, window_params = [{transform_indices = @transform_0, window_bounds = array<i64: 1, 4, 256>}, {transform_indices = @transform_1, window_bounds = array<i64: 1, 4, 256>}, {transform_indices = @transform_2, window_bounds = array<i64: 1, 4, 256>}]} {
    %c0_i32 = arith.constant 0 : i32
    %0 = arith.cmpi eq, %arg2, %c0_i32 : i32
    %1 = arith.extui %0 : i1 to i32
    %c0_i32_0 = arith.constant 0 : i32
    %2 = arith.cmpi ne, %1, %c0_i32_0 : i32
    scf.if %2 {
      %cst_22 = arith.constant 0xFF800000 : f32
      %32 = vector.broadcast %cst_22 : f32 to vector<1x256xf32>
      %c0_23 = arith.constant 0 : index
      %c0_24 = arith.constant 0 : index
      %33 = vector.load %arg6[%c0_23, %c0_24] : memref<1x256xf32, #tpu.memory_space<vmem>>, vector<1x256xf32>
      tpu.vector_store %arg6[%c0_23, %c0_24], %32 {strides = array<i32>} : memref<1x256xf32, #tpu.memory_space<vmem>>, vector<1x256xf32>,
      %cst_25 = arith.constant 0.000000e+00 : f32
      %34 = vector.broadcast %cst_25 : f32 to vector<1x256xf32>
      %c0_26 = arith.constant 0 : index
      %c0_27 = arith.constant 0 : index
      %35 = vector.load %arg7[%c0_26, %c0_27] : memref<1x256xf32, #tpu.memory_space<vmem>>, vector<1x256xf32>
      tpu.vector_store %arg7[%c0_26, %c0_27], %34 {strides = array<i32>} : memref<1x256xf32, #tpu.memory_space<vmem>>, vector<1x256xf32>,
      %cst_28 = arith.constant 0.000000e+00 : f32
      %36 = vector.broadcast %cst_28 : f32 to vector<4x256xf32>
      %c0_29 = arith.constant 0 : index
      %c0_30 = arith.constant 0 : index
      %37 = vector.load %arg8[%c0_29, %c0_30] : memref<4x256xf32, #tpu.memory_space<vmem>>, vector<4x256xf32>
      tpu.vector_store %arg8[%c0_29, %c0_30], %36 {strides = array<i32>} : memref<4x256xf32, #tpu.memory_space<vmem>>, vector<4x256xf32>,
      %c0_31 = arith.constant 0 : index
      %c0_32 = arith.constant 0 : index
      %c0_33 = arith.constant 0 : index
      %38 = vector.load %arg3[%c0_31, %c0_32, %c0_33] : memref<1x4x256xf32, #tpu.memory_space<vmem>>, vector<1x4x256xf32>
      %39 = vector.shape_cast %38 : vector<1x4x256xf32> to vector<4x256xf32>
      %cst_34 = arith.constant 5.000000e-01 : f32
      %40 = vector.broadcast %cst_34 : f32 to vector<4x256xf32>
      %41 = arith.mulf %39, %40 : vector<4x256xf32>
      %c0_35 = arith.constant 0 : index
      %c0_36 = arith.constant 0 : index
      %42 = vector.load %arg9[%c0_35, %c0_36] : memref<4x256xf32, #tpu.memory_space<vmem>>, vector<4x256xf32>
      tpu.vector_store %arg9[%c0_35, %c0_36], %41 {strides = array<i32>} : memref<4x256xf32, #tpu.memory_space<vmem>>, vector<4x256xf32>,
    } else {
    }
    %c0 = arith.constant 0 : index
    %c0_1 = arith.constant 0 : index
    %3 = vector.load %arg9[%c0, %c0_1] : memref<4x256xf32, #tpu.memory_space<vmem>>, vector<4x256xf32>
    %c0_2 = arith.constant 0 : index
    %c0_3 = arith.constant 0 : index
    %c0_4 = arith.constant 0 : index
    %4 = vector.load %arg4[%c0_2, %c0_3, %c0_4] : memref<1x4x256xf32, #tpu.memory_space<vmem>>, vector<1x4x256xf32>
    %5 = vector.shape_cast %4 : vector<1x4x256xf32> to vector<4x256xf32>
    %cst = arith.constant dense<0.000000e+00> : vector<256x256xf32>
    %6 = tpu.matmul %5, %3, %cst {dimension_numbers = #tpu.dot_dimension_numbers<[0], [0], [1], [1], [0, 1, 1, 1], [], []>} : vector<4x256xf32>, vector<4x256xf32>, vector<256x256xf32> -> vector<256x256xf32>
    %c0_5 = arith.constant 0 : index
    %c0_6 = arith.constant 0 : index
    %7 = vector.load %arg6[%c0_5, %c0_6] : memref<1x256xf32, #tpu.memory_space<vmem>>, vector<1x256xf32>
    %cst_7 = arith.constant dense<0xFF800000> : vector<256xf32>
    %8 = vector.multi_reduction <maximumf>, %6, %cst_7 [0] : vector<256x256xf32> to vector<256xf32>
    %9 = vector.shape_cast %8 : vector<256xf32> to vector<1x256xf32>
    %10 = arith.maximumf %7, %9 : vector<1x256xf32>
    %11 = arith.subf %7, %10 : vector<1x256xf32>
    %12 = math.exp %11 : vector<1x256xf32>
    %13 = vector.broadcast %10 : vector<1x256xf32> to vector<256x256xf32>
    %14 = arith.subf %6, %13 : vector<256x256xf32>
    %15 = math.exp %14 : vector<256x256xf32>
    %c0_8 = arith.constant 0 : index
    %c0_9 = arith.constant 0 : index
    %16 = vector.load %arg7[%c0_8, %c0_9] : memref<1x256xf32, #tpu.memory_space<vmem>>, vector<1x256xf32>
    %17 = arith.mulf %12, %16 : vector<1x256xf32>
    %cst_10 = arith.constant dense<0.000000e+00> : vector<256xf32>
    %18 = vector.multi_reduction <add>, %15, %cst_10 [0] : vector<256x256xf32> to vector<256xf32>
    %19 = vector.shape_cast %18 : vector<256xf32> to vector<1x256xf32>
    %20 = arith.addf %17, %19 : vector<1x256xf32>
    %c0_11 = arith.constant 0 : index
    %c0_12 = arith.constant 0 : index
    %21 = vector.load %arg7[%c0_11, %c0_12] : memref<1x256xf32, #tpu.memory_space<vmem>>, vector<1x256xf32>
    tpu.vector_store %arg7[%c0_11, %c0_12], %20 {strides = array<i32>} : memref<1x256xf32, #tpu.memory_space<vmem>>, vector<1x256xf32>,
    %cst_13 = arith.constant dense<0.000000e+00> : vector<4x256xf32>
    %22 = tpu.matmul %5, %15, %cst_13 {dimension_numbers = #tpu.dot_dimension_numbers<[1], [0], [0], [1], [0, 0, 1, 1], [], []>} : vector<4x256xf32>, vector<256x256xf32>, vector<4x256xf32> -> vector<4x256xf32>
    %c0_14 = arith.constant 0 : index
    %c0_15 = arith.constant 0 : index
    %23 = vector.load %arg8[%c0_14, %c0_15] : memref<4x256xf32, #tpu.memory_space<vmem>>, vector<4x256xf32>
    %24 = vector.broadcast %12 : vector<1x256xf32> to vector<4x256xf32>
    %25 = arith.mulf %24, %23 : vector<4x256xf32>
    %26 = arith.addf %25, %22 : vector<4x256xf32>
    %c0_16 = arith.constant 0 : index
    %c0_17 = arith.constant 0 : index
    %27 = vector.load %arg8[%c0_16, %c0_17] : memref<4x256xf32, #tpu.memory_space<vmem>>, vector<4x256xf32>
    tpu.vector_store %arg8[%c0_16, %c0_17], %26 {strides = array<i32>} : memref<4x256xf32, #tpu.memory_space<vmem>>, vector<4x256xf32>,
    %c0_18 = arith.constant 0 : index
    %c0_19 = arith.constant 0 : index
    %28 = vector.load %arg6[%c0_18, %c0_19] : memref<1x256xf32, #tpu.memory_space<vmem>>, vector<1x256xf32>
    tpu.vector_store %arg6[%c0_18, %c0_19], %10 {strides = array<i32>} : memref<1x256xf32, #tpu.memory_space<vmem>>, vector<1x256xf32>,
    %c0_i32_20 = arith.constant 0 : i32
    %29 = arith.cmpi eq, %arg2, %c0_i32_20 : i32
    %30 = arith.extui %29 : i1 to i32
    %c0_i32_21 = arith.constant 0 : i32
    %31 = arith.cmpi ne, %30, %c0_i32_21 : i32
    scf.if %31 {
      %c0_22 = arith.constant 0 : index
      %c0_23 = arith.constant 0 : index
      %32 = vector.load %arg8[%c0_22, %c0_23] : memref<4x256xf32, #tpu.memory_space<vmem>>, vector<4x256xf32>
      %c0_24 = arith.constant 0 : index
      %c0_25 = arith.constant 0 : index
      %33 = vector.load %arg7[%c0_24, %c0_25] : memref<1x256xf32, #tpu.memory_space<vmem>>, vector<1x256xf32>
      %34 = vector.broadcast %33 : vector<1x256xf32> to vector<4x256xf32>
      %35 = arith.divf %32, %34 : vector<4x256xf32>
      %c0_26 = arith.constant 0 : index
      %c0_27 = arith.constant 0 : index
      %c0_28 = arith.constant 0 : index
      %36 = vector.load %arg3[%c0_26, %c0_27, %c0_28] : memref<1x4x256xf32, #tpu.memory_space<vmem>>, vector<1x4x256xf32>
      %37 = vector.shape_cast %36 : vector<1x4x256xf32> to vector<4x256xf32>
      %38 = arith.addf %35, %37 : vector<4x256xf32>
      %c0_29 = arith.constant 0 : index
      %c0_30 = arith.constant 0 : index
      %c0_31 = arith.constant 0 : index
      %39 = vector.load %arg5[%c0_29, %c0_30, %c0_31] : memref<1x4x256xf32, #tpu.memory_space<vmem>>, vector<1x4x256xf32>
      %40 = vector.shape_cast %39 : vector<1x4x256xf32> to vector<4x256xf32>
      %41 = vector.shape_cast %38 : vector<4x256xf32> to vector<1x4x256xf32>
      tpu.vector_store %arg5[%c0_29, %c0_30, %c0_31], %41 {strides = array<i32>} : memref<1x4x256xf32, #tpu.memory_space<vmem>>, vector<1x4x256xf32>,
    } else {
    }
    return
  }
  func.func @transform_0(%arg0: i32, %arg1: i32, %arg2: i32) -> (i32, i32, i32) {
    %c0_i32 = arith.constant 0 : i32
    %c0_i32_0 = arith.constant 0 : i32
    return %arg0, %c0_i32, %arg1 : i32, i32, i32
  }
  func.func @transform_1(%arg0: i32, %arg1: i32, %arg2: i32) -> (i32, i32, i32) {
    %c0_i32 = arith.constant 0 : i32
    %c0_i32_0 = arith.constant 0 : i32
    return %arg0, %c0_i32, %arg2 : i32, i32, i32
  }
  func.func @transform_2(%arg0: i32, %arg1: i32, %arg2: i32) -> (i32, i32, i32) {
    %c0_i32 = arith.constant 0 : i32
    %c0_i32_0 = arith.constant 0 : i32
    return %arg0, %c0_i32, %arg1 : i32, i32, i32
  }
}

</mosaic_0001>

<llo_original>
// kernel: tpu_custom_call.1
$region0: #{tpu_custom_call.1}
  #allocation0 [shape = 'u32[]', space=smem, size = 0x4, offset = 0x4, fixed_abs, tag = 'smem constant byte address 0x4 - core index']
  #allocation1 [shape = 'u32[72,128]{1,0:T(1,128)}', space=vmem, size = 0x9000, scoped, tag = 'internal scratch']
  #allocation2 [shape = 'f32[1,256]{1,0:T(1,128)}', space=vmem, size = 0x400, scoped, tag = 'scratch operand']
  #allocation3 [shape = 'f32[1,256]{1,0:T(1,128)}', space=vmem, size = 0x400, scoped, tag = 'scratch operand']
  #allocation4 [shape = 'f32[4,256]{1,0:T(4,128)}', space=vmem, size = 0x1000, scoped, tag = 'scratch operand']
  #allocation5 [shape = 'f32[4,256]{1,0:T(4,128)}', space=vmem, size = 0x1000, scoped, tag = 'scratch operand']
  %s0 = inlined_call_operand.hbm [shape: f32[2,4,256], index: 0, kind: input, shape index: {}]
  %s1 = inlined_call_operand.hbm [shape: f32[2,4,256], index: 1, kind: input, shape index: {}]
  %s2 = inlined_call_operand.hbm [shape: f32[2,4,256], index: 2, kind: output, shape index: {}]
  %s3 = sld [smem:[#allocation0]]
  $region57: #{tpu_custom_call.1} parent=0
    _
  %s5 = ssub.s32 1, %s3
  %s6 = scalar_select 0, %s5, %s3
  $region1: #{tpu_custom_call.1} parent=0
    #allocation6 [shape = 'u8[8192]{0}', space=vmem, size = 0x2000, scoped, tag = 'input window, operand 0']
    #allocation7 [shape = 's32[2]{0}', space=sflag, size = 0x8, scoped, tag = 'scoped memory for tpu_custom_call.1']
    #allocation8 [shape = 's32[2]{0}', space=sflag, size = 0x8, scoped, tag = 'scoped memory for tpu_custom_call.1']
    #allocation9 [shape = 'u8[8192]{0}', space=vmem, size = 0x2000, scoped, tag = 'input window, operand 1']
    #allocation10 [shape = 's32[2]{0}', space=sflag, size = 0x8, scoped, tag = 'scoped memory for tpu_custom_call.1']
    #allocation11 [shape = 'u8[8192]{0}', space=vmem, size = 0x2000, scoped, tag = 'output window, operand 0']
    %7 = vsyncpa [#allocation7], 0
    %s8 = scalar_lea.sflag [#allocation7], 1
    %9 = vsyncpa %s8, 0
    %10 = vsyncpa [#allocation10], 0
    %s11 = scalar_lea.sflag [#allocation10], 1
    %12 = vsyncpa %s11, 0
    %13 = vsyncpa [#allocation8], 0
    %s14 = scalar_lea.sflag [#allocation8], 1
    %15 = vsyncpa %s14, 0
    loop: start=0, step=1, limit=4
    $region2: #{tpu_custom_call.1} parent=1 // loop_pre_header
      _
    $region3: #{tpu_custom_call.1} parent=1 // loop_header
      %s17 = sphi 0, %s21
      %p18 = scmp.ge.s32.totalorder %s17, 4
      %s24 = sphi 0, %s43
      %s25 = sphi 0, %s39
      %s26 = sphi 0, %s35
      %s27 = sphi 0, %s24
      %s28 = sphi 0, %s25
      %s29 = sphi 0, %s26
      %s30 = sphi 0, %s27
      %s31 = sphi 0, %s28
      %s32 = sphi 0, %s29
      %s48 = sphi 0, %s50
      %s51 = sphi 0, %s48
      %s52 = sphi 0, %s51
      %s68 = sphi 0, %s52
      %s76 = sphi 0, %s78
      %s79 = sphi 0, %s76
      %s80 = sphi 0, %s79
      %s96 = sphi 0, %s80
      %s104 = sphi 0, %s106
      %s107 = sphi 0, %s104
      %s108 = sphi 0, %s107
      %s124 = sphi 0, %s108
    $region4: #{tpu_custom_call.1} parent=1 // loop_header_branch
      %20 = sbr.rel (%p18) target = $region8
    $region5: #{tpu_custom_call.1} parent=1 // loop_body
      %s22 = ssub.s32 %s17, 1
      %s23 = ssub.s32 %s17, 2
      %s33 = sadd.s32 1, %s26
      %p34 = scmp.ge.s32.totalorder %s33, 1
      %s35 = scalar_select %p34, 0, %s33
      %s36 = sadd.s32 1, %s25
      %s37 = scalar_select %p34, %s36, %s25
      %p38 = scmp.ge.s32.totalorder %s37, 1
      %s39 = scalar_select %p38, 0, %s37
      %s40 = sadd.s32 1, %s24
      %s41 = scalar_select %p38, %s40, %s24
      %p42 = scmp.ge.s32.totalorder %s41, 2
      %s43 = scalar_select %p42, 0, %s41
      %s44 = ssub.s32 %s24, %s43
      %s45 = ssub.s32 %s25, %s39
      %s46 = sor.u32 %s44, %s45
      %p47 = scmp.eq.s32.totalorder %s46, 0
      %s49 = sadd.s32 %s48, 1
      %s50 = scalar_select %p47, %s48, %s49
      %p53 = pneg %p47
      %p54 = scmp.eq.s32.totalorder %s17, 1
      %p55 = por %p53, %p54
      %p56 = scmp.ne.s32.totalorder %s48, %s51
      %p57 = scmp.eq.s32.totalorder %s17, 0
      %p58 = por %p56, %p57
      %p59 = scmp.ne.s32.totalorder %s48, %s51
      %p60 = scmp.eq.s32.totalorder %s22, 1
      %p61 = por %p59, %p60
      %p62 = scmp.ne.s32.totalorder %s51, %s52
      %p63 = scmp.eq.s32.totalorder %s22, 0
      %p64 = por %p62, %p63
      %p65 = scmp.ne.s32.totalorder %s51, %s52
      %p66 = scmp.eq.s32.totalorder %s23, 1
      %p67 = por %p65, %p66
      %p69 = scmp.ne.s32.totalorder %s52, %s68
      %p70 = scmp.eq.s32.totalorder %s23, 0
      %p71 = por %p69, %p70
      %s72 = ssub.s32 %s24, %s43
      %s73 = ssub.s32 %s26, %s35
      %s74 = sor.u32 %s72, %s73
      %p75 = scmp.eq.s32.totalorder %s74, 0
      %s77 = sadd.s32 %s76, 1
      %s78 = scalar_select %p75, %s76, %s77
      %p81 = pneg %p75
      %p82 = scmp.eq.s32.totalorder %s17, 1
      %p83 = por %p81, %p82
      %p84 = scmp.ne.s32.totalorder %s76, %s79
      %p85 = scmp.eq.s32.totalorder %s17, 0
      %p86 = por %p84, %p85
      %p87 = scmp.ne.s32.totalorder %s76, %s79
      %p88 = scmp.eq.s32.totalorder %s22, 1
      %p89 = por %p87, %p88
      %p90 = scmp.ne.s32.totalorder %s79, %s80
      %p91 = scmp.eq.s32.totalorder %s22, 0
      %p92 = por %p90, %p91
      %p93 = scmp.ne.s32.totalorder %s79, %s80
      %p94 = scmp.eq.s32.totalorder %s23, 1
      %p95 = por %p93, %p94
      %p97 = scmp.ne.s32.totalorder %s80, %s96
      %p98 = scmp.eq.s32.totalorder %s23, 0
      %p99 = por %p97, %p98
      %s100 = ssub.s32 %s24, %s43
      %s101 = ssub.s32 %s25, %s39
      %s102 = sor.u32 %s100, %s101
      %p103 = scmp.eq.s32.totalorder %s102, 0
      %s105 = sadd.s32 %s104, 1
      %s106 = scalar_select %p103, %s104, %s105
      %p109 = pneg %p103
      %p110 = scmp.eq.s32.totalorder %s17, 1
      %p111 = por %p109, %p110
      %p112 = scmp.ne.s32.totalorder %s104, %s107
      %p113 = scmp.eq.s32.totalorder %s17, 0
      %p114 = por %p112, %p113
      %p115 = scmp.ne.s32.totalorder %s104, %s107
      %p116 = scmp.eq.s32.totalorder %s22, 1
      %p117 = por %p115, %p116
      %p118 = scmp.ne.s32.totalorder %s107, %s108
      %p119 = scmp.eq.s32.totalorder %s22, 0
      %p120 = por %p118, %p119
      %p121 = scmp.ne.s32.totalorder %s107, %s108
      %p122 = scmp.eq.s32.totalorder %s23, 1
      %p123 = por %p121, %p122
      %p125 = scmp.ne.s32.totalorder %s108, %s124
      %p126 = scmp.eq.s32.totalorder %s23, 0
      %p127 = por %p125, %p126
      %p128 = scmp.le.s32.totalorder 1, %s17
      %p129 = scmp.lt.s32.totalorder %s17, 3
      %p130 = pnand %p128, %p129
      %p131 = pneg %p130
      // Predicated region
      $region9: #{tpu_custom_call.1} parent=5 // pred_check
        _
      $region10: #{tpu_custom_call.1} parent=5 // pred_check_branch
        %133 = sbr.rel (%p130) target = $region12
      $region11: #{tpu_custom_call.1} parent=5 // pred_region
        %s134 = ssub.s32 %s17, 1
      $region12: #{tpu_custom_call.1} parent=5 // pred_fallthru
        _
      %p135 = scmp.lt.s32.totalorder %s17, 2
      // Predicated region
      $region13: #{tpu_custom_call.1} parent=5 // pred_check
        %p136 = pneg %p135
      $region14: #{tpu_custom_call.1} parent=5 // pred_check_branch
        %138 = sbr.rel (%p136) target = $region16
      $region15: #{tpu_custom_call.1} parent=5 // pred_region
        // Predicated region
        $region17: #{tpu_custom_call.1} parent=15 // pred_check
          %p139 = pneg %p58
        $region18: #{tpu_custom_call.1} parent=15 // pred_check_branch
          %141 = sbr.rel (%p139) target = $region20
        $region19: #{tpu_custom_call.1} parent=15 // pred_region
          %s142 = sand.u32 %s48, 1
          %s143 = scalar_lea.sflag [#allocation7], %s142
          %s144 = sand.u32 %s48, 1
          %s145 = smul.addr %s144, 8
          %s146 = scalar_lea.vmem [#allocation6], %s145
          %s147 = smul.u32 2, %s25
          %149 = vsyncadd %s143, 0
          %s150 = smul.addr %s24, 2
          %s151 = sadd.s32 %s147, %s150
          %s152 = smul.addr %s151, 4
          %s153 = scalar_lea.hbm %s0, %s152
          %s155 = sshll.u32 %s153, 4
          %s156 = int_to_ptr.hbm [resolvable:$true] %s155
          %s157 = sshll.u32 %s146, 4
          %s158 = int_to_ptr.vmem [resolvable:$true] %s157
          %160 = dma.hbm_to_vmem [thread:$0]  %s156, 128, %s158, %s143
        $region20: #{tpu_custom_call.1} parent=15 // pred_fallthru
          _
        // Predicated region
        $region21: #{tpu_custom_call.1} parent=15 // pred_check
          %p161 = pneg %p86
        $region22: #{tpu_custom_call.1} parent=15 // pred_check_branch
          %163 = sbr.rel (%p161) target = $region24
        $region23: #{tpu_custom_call.1} parent=15 // pred_region
          %s164 = sand.u32 %s76, 1
          %s165 = scalar_lea.sflag [#allocation10], %s164
          %s166 = sand.u32 %s76, 1
          %s167 = smul.addr %s166, 8
          %s168 = scalar_lea.vmem [#allocation9], %s167
          %s169 = smul.u32 2, %s26
          %171 = vsyncadd %s165, 0
          %s172 = smul.addr %s24, 2
          %s173 = sadd.s32 %s169, %s172
          %s174 = smul.addr %s173, 4
          %s175 = scalar_lea.hbm %s1, %s174
          %s177 = sshll.u32 %s175, 4
          %s178 = int_to_ptr.hbm [resolvable:$true] %s177
          %s179 = sshll.u32 %s168, 4
          %s180 = int_to_ptr.vmem [resolvable:$true] %s179
          %182 = dma.hbm_to_vmem [thread:$0]  %s178, 128, %s180, %s165
        $region24: #{tpu_custom_call.1} parent=15 // pred_fallthru
          _
      $region16: #{tpu_custom_call.1} parent=5 // pred_fallthru
        _
      %p183 = scmp.le.s32.totalorder 1, %s17
      %p184 = scmp.lt.s32.totalorder %s17, 3
      %p185 = pnand %p183, %p184
      %p186 = pneg %p185
      // Predicated region
      $region25: #{tpu_custom_call.1} parent=5 // pred_check
        _
      $region26: #{tpu_custom_call.1} parent=5 // pred_check_branch
        %188 = sbr.rel (%p185) target = $region28
      $region27: #{tpu_custom_call.1} parent=5 // pred_region
        %s189 = ssub.s32 %s17, 1
        %s190 = sand.u32 %s51, 1
        %s191 = scalar_lea.sflag [#allocation7], %s190
        %s192 = sand.u32 %s51, 1
        %s193 = smul.addr %s192, 8
        %s194 = scalar_lea.vmem [#allocation6], %s193
        // Predicated region
        $region29: #{tpu_custom_call.1} parent=27 // pred_check
          %p195 = pneg %p64
        $region30: #{tpu_custom_call.1} parent=27 // pred_check_branch
          %197 = sbr.rel (%p195) target = $region32
        $region31: #{tpu_custom_call.1} parent=27 // pred_region
          %199 = dma.done %s191, 128
        $region32: #{tpu_custom_call.1} parent=27 // pred_fallthru
          _
        %s200 = sand.u32 %s79, 1
        %s201 = scalar_lea.sflag [#allocation10], %s200
        %s202 = sand.u32 %s79, 1
        %s203 = smul.addr %s202, 8
        %s204 = scalar_lea.vmem [#allocation9], %s203
        // Predicated region
        $region33: #{tpu_custom_call.1} parent=27 // pred_check
          %p205 = pneg %p92
        $region34: #{tpu_custom_call.1} parent=27 // pred_check_branch
          %207 = sbr.rel (%p205) target = $region36
        $region35: #{tpu_custom_call.1} parent=27 // pred_region
          %209 = dma.done %s201, 128
        $region36: #{tpu_custom_call.1} parent=27 // pred_fallthru
          _
        %s210 = sand.u32 %s51, 1
        %s211 = scalar_lea.sflag [#allocation7], %s210
        %s212 = sand.u32 %s51, 1
        %s213 = smul.addr %s212, 8
        %s214 = scalar_lea.vmem [#allocation6], %s213
        %p215 = pneg %p64
        %p216 = pneg %p61
        %s217 = sand.u32 %s79, 1
        %s218 = scalar_lea.sflag [#allocation10], %s217
        %s219 = sand.u32 %s79, 1
        %s220 = smul.addr %s219, 8
        %s221 = scalar_lea.vmem [#allocation9], %s220
        %p222 = pneg %p92
        %p223 = pneg %p89
        %p224 = pneg %p120
        %p225 = pneg %p117
        %s226 = sand.u32 %s107, 1
        %s227 = scalar_lea.sflag [#allocation8], %s226
        %s228 = sand.u32 %s107, 1
        %s229 = smul.addr %s228, 8
        %s230 = scalar_lea.vmem [#allocation11], %s229
        %s231 = smul.u32 2, %s28
        %s232 = smul.u32 2, %s29
        %s233 = smul.u32 2, %s28
        %p234 = scmp.eq.s32.totalorder %s29, 0
        // Predicated region
        $region37: #{tpu_custom_call.1} parent=27 // pred_check
          %p235 = pneg %p234
        $region38: #{tpu_custom_call.1} parent=27 // pred_check_branch
          %237 = sbr.rel (%p235) target = $region40
        $region39: #{tpu_custom_call.1} parent=27 // pred_region
          %v238 = vlaneseq
          %vm239 = vcmp.ge.s32.totalorder %v238, 0
          %vm240 = vcmp.lt.s32.totalorder %v238, 256
          %vm241 = vmand %vm239, %vm240
          %242 = vst.msk [vmem:[#allocation2] sm:$0x3] %vm241, -inf
          %243 = vst.msk [vmem:[#allocation3] sm:$0x3] %vm241, 0.0
          %244 = vst [vmem:[#allocation4] sm:$0xff] 0.0
          %v245 = vld [vmem:[%s194] sm:$0xff]
          %v246 = vmul.f32 %v245, 0.5
          %247 = vst [vmem:[#allocation5] sm:$0xff] %v246
        $region40: #{tpu_custom_call.1} parent=27 // pred_fallthru
          _
        %v248 = vld [vmem:[#allocation5] sm:$0xff]
        %v249 = vld [vmem:[%s204] sm:$0xff]
        %251 = vst [vmem:[#allocation1] ss:$2 sm:$0xff] %v249
        %v252 = vld.sshfl [vmem:[#allocation1] sm:$0xff pattern:$0x75316420]
        %v253 = vld.sshfl [vmem:[#allocation1 + $0x8] sm:$0xff pattern:$0x75316420]
        %256 = vxpose.xlu0.b32.start [1/16] %v252, 128
        %257 = vxpose.xlu0.b32.cont [2/16] 0.0, 128
        %258 = vxpose.xlu0.b32.cont [3/16] 0.0, 128
        %259 = vxpose.xlu0.b32.cont [4/16] 0.0, 128
        %260 = vxpose.xlu0.b32.cont [5/16] 0.0, 128
        %261 = vxpose.xlu0.b32.cont [6/16] 0.0, 128
        %262 = vxpose.xlu0.b32.cont [7/16] 0.0, 128
        %263 = vxpose.xlu0.b32.cont [8/16] 0.0, 128
        %264 = vxpose.xlu0.b32.cont [9/16] 0.0, 128
        %265 = vxpose.xlu0.b32.cont [10/16] 0.0, 128
        %266 = vxpose.xlu0.b32.cont [11/16] 0.0, 128
        %267 = vxpose.xlu0.b32.cont [12/16] 0.0, 128
        %268 = vxpose.xlu0.b32.cont [13/16] 0.0, 128
        %269 = vxpose.xlu0.b32.cont [14/16] 0.0, 128
        %270 = vxpose.xlu0.b32.cont [15/16] 0.0, 128
        %271 = vxpose.xlu0.b32.end [16/16] 0.0, 128
        %v272 = vpop.trf.xlu0
        %v273 = vpop.trf.xlu0
        %v274 = vpop.trf.xlu0
        %v275 = vpop.trf.xlu0
        %v276 = vpop.trf.xlu0
        %v277 = vpop.trf.xlu0
        %v278 = vpop.trf.xlu0
        %v279 = vpop.trf.xlu0
        %v280 = vpop.trf.xlu0
        %v281 = vpop.trf.xlu0
        %v282 = vpop.trf.xlu0
        %v283 = vpop.trf.xlu0
        %v284 = vpop.trf.xlu0
        %v285 = vpop.trf.xlu0
        %v286 = vpop.trf.xlu0
        %v287 = vpop.trf.xlu0
        %288 = vxpose.xlu0.b32.start [1/16] %v253, 128
        %289 = vxpose.xlu0.b32.cont [2/16] 0.0, 128
        %290 = vxpose.xlu0.b32.cont [3/16] 0.0, 128
        %291 = vxpose.xlu0.b32.cont [4/16] 0.0, 128
        %292 = vxpose.xlu0.b32.cont [5/16] 0.0, 128
        %293 = vxpose.xlu0.b32.cont [6/16] 0.0, 128
        %294 = vxpose.xlu0.b32.cont [7/16] 0.0, 128
        %295 = vxpose.xlu0.b32.cont [8/16] 0.0, 128
        %296 = vxpose.xlu0.b32.cont [9/16] 0.0, 128
        %297 = vxpose.xlu0.b32.cont [10/16] 0.0, 128
        %298 = vxpose.xlu0.b32.cont [11/16] 0.0, 128
        %299 = vxpose.xlu0.b32.cont [12/16] 0.0, 128
        %300 = vxpose.xlu0.b32.cont [13/16] 0.0, 128
        %301 = vxpose.xlu0.b32.cont [14/16] 0.0, 128
        %302 = vxpose.xlu0.b32.cont [15/16] 0.0, 128
        %303 = vxpose.xlu0.b32.end [16/16] 0.0, 128
        %v304 = vpop.trf.xlu0
        %v305 = vpop.trf.xlu0
        %v306 = vpop.trf.xlu0
        %v307 = vpop.trf.xlu0
        %v308 = vpop.trf.xlu0
        %v309 = vpop.trf.xlu0
        %v310 = vpop.trf.xlu0
        %v311 = vpop.trf.xlu0
        %v312 = vpop.trf.xlu0
        %v313 = vpop.trf.xlu0
        %v314 = vpop.trf.xlu0
        %v315 = vpop.trf.xlu0
        %v316 = vpop.trf.xlu0
        %v317 = vpop.trf.xlu0
        %v318 = vpop.trf.xlu0
        %v319 = vpop.trf.xlu0
        %321 = vst [vmem:[#allocation1] ss:$2 sm:$0xff] %v248
        %v322 = vld.sshfl [vmem:[#allocation1] sm:$0xff pattern:$0x75316420]
        %v323 = vld.sshfl [vmem:[#allocation1 + $0x8] sm:$0xff pattern:$0x75316420]
        %vm324 = vcmask 31744
        %v326 = vsel %vm324, %v272, 0
        %v329 = vsel %vm324, %v273, 0
        %v332 = vsel %vm324, %v274, 0
        %v335 = vsel %vm324, %v275, 0
        %v338 = vsel %vm324, %v276, 0
        %v341 = vsel %vm324, %v277, 0
        %v344 = vsel %vm324, %v278, 0
        %v347 = vsel %vm324, %v279, 0
        %v350 = vsel %vm324, %v280, 0
        %v353 = vsel %vm324, %v281, 0
        %v356 = vsel %vm324, %v282, 0
        %v359 = vsel %vm324, %v283, 0
        %v362 = vsel %vm324, %v284, 0
        %v365 = vsel %vm324, %v285, 0
        %v368 = vsel %vm324, %v286, 0
        %v371 = vsel %vm324, %v287, 0
        %v374 = vsel %vm324, %v304, 0
        %v377 = vsel %vm324, %v305, 0
        %v380 = vsel %vm324, %v306, 0
        %v383 = vsel %vm324, %v307, 0
        %v386 = vsel %vm324, %v308, 0
        %v389 = vsel %vm324, %v309, 0
        %v392 = vsel %vm324, %v310, 0
        %v395 = vsel %vm324, %v311, 0
        %v398 = vsel %vm324, %v312, 0
        %v401 = vsel %vm324, %v313, 0
        %v404 = vsel %vm324, %v314, 0
        %v407 = vsel %vm324, %v315, 0
        %v410 = vsel %vm324, %v316, 0
        %v413 = vsel %vm324, %v317, 0
        %v416 = vsel %vm324, %v318, 0
        %v419 = vsel %vm324, %v319, 0
        %vm421 = vcmask 1043456
        %v422 = vsel %vm421, %v322, 0
        %v424 = vsel %vm421, %v323, 0
        %426 = vmatpush.msra.mxu0 0.0
        %427 = vmatpush.msra.mxu0 0.0
        %428 = vmatpush.msra.mxu0 0.0
        %429 = vmatpush.msra.mxu0 0.0
        %430 = vmatpush.msra.mxu0 0.0
        %431 = vmatpush.msra.mxu0 0.0
        %432 = vmatpush.msra.mxu0 0.0
        %433 = vmatpush.msra.mxu0 0.0
        %434 = vmatpush.msra.mxu0 0.0
        %435 = vmatpush.msra.mxu0 0.0
        %436 = vmatpush.msra.mxu0 0.0
        %437 = vmatpush.msra.mxu0 0.0
        %438 = vmatpush.msra.mxu0 0.0
        %439 = vmatpush.msra.mxu0 0.0
        %440 = vmatpush.msra.mxu0 0.0
        %441 = vmatpush.msra.mxu0 %v422
        %442 = vmatmul.f32.gmra.mxu0 %v326
        %v443 = vpop.f32.mrf.mxu0
        %v444 = vadd.f32 0.0, %v443
        %445 = vmatmul.f32.gmra.mxu0 %v329
        %v446 = vpop.f32.mrf.mxu0
        %v447 = vadd.f32 0.0, %v446
        %448 = vmatmul.f32.gmra.mxu0 %v332
        %v449 = vpop.f32.mrf.mxu0
        %v450 = vadd.f32 0.0, %v449
        %451 = vmatmul.f32.gmra.mxu0 %v335
        %v452 = vpop.f32.mrf.mxu0
        %v453 = vadd.f32 0.0, %v452
        %454 = vmatmul.f32.gmra.mxu0 %v338
        %v455 = vpop.f32.mrf.mxu0
        %v456 = vadd.f32 0.0, %v455
        %457 = vmatmul.f32.gmra.mxu0 %v341
        %v458 = vpop.f32.mrf.mxu0
        %v459 = vadd.f32 0.0, %v458
        %460 = vmatmul.f32.gmra.mxu0 %v344
        %v461 = vpop.f32.mrf.mxu0
        %v462 = vadd.f32 0.0, %v461
        %463 = vmatmul.f32.gmra.mxu0 %v347
        %v464 = vpop.f32.mrf.mxu0
        %v465 = vadd.f32 0.0, %v464
        %466 = vmatmul.f32.gmra.mxu0 %v350
        %v467 = vpop.f32.mrf.mxu0
        %v468 = vadd.f32 0.0, %v467
        %469 = vmatmul.f32.gmra.mxu0 %v353
        %v470 = vpop.f32.mrf.mxu0
        %v471 = vadd.f32 0.0, %v470
        %472 = vmatmul.f32.gmra.mxu0 %v356
        %v473 = vpop.f32.mrf.mxu0
        %v474 = vadd.f32 0.0, %v473
        %475 = vmatmul.f32.gmra.mxu0 %v359
        %v476 = vpop.f32.mrf.mxu0
        %v477 = vadd.f32 0.0, %v476
        %478 = vmatmul.f32.gmra.mxu0 %v362
        %v479 = vpop.f32.mrf.mxu0
        %v480 = vadd.f32 0.0, %v479
        %481 = vmatmul.f32.gmra.mxu0 %v365
        %v482 = vpop.f32.mrf.mxu0
        %v483 = vadd.f32 0.0, %v482
        %484 = vmatmul.f32.gmra.mxu0 %v368
        %v485 = vpop.f32.mrf.mxu0
        %v486 = vadd.f32 0.0, %v485
        %487 = vmatmul.f32.gmra.mxu0 %v371
        %v488 = vpop.f32.mrf.mxu0
        %v489 = vadd.f32 0.0, %v488
        %490 = vmatmul.f32.gmra.mxu0 %v374
        %v491 = vpop.f32.mrf.mxu0
        %v492 = vadd.f32 0.0, %v491
        %493 = vmatmul.f32.gmra.mxu0 %v377
        %v494 = vpop.f32.mrf.mxu0
        %v495 = vadd.f32 0.0, %v494
        %496 = vmatmul.f32.gmra.mxu0 %v380
        %v497 = vpop.f32.mrf.mxu0
        %v498 = vadd.f32 0.0, %v497
        %499 = vmatmul.f32.gmra.mxu0 %v383
        %v500 = vpop.f32.mrf.mxu0
        %v501 = vadd.f32 0.0, %v500
        %502 = vmatmul.f32.gmra.mxu0 %v386
        %v503 = vpop.f32.mrf.mxu0
        %v504 = vadd.f32 0.0, %v503
        %505 = vmatmul.f32.gmra.mxu0 %v389
        %v506 = vpop.f32.mrf.mxu0
        %v507 = vadd.f32 0.0, %v506
        %508 = vmatmul.f32.gmra.mxu0 %v392
        %v509 = vpop.f32.mrf.mxu0
        %v510 = vadd.f32 0.0, %v509
        %511 = vmatmul.f32.gmra.mxu0 %v395
        %v512 = vpop.f32.mrf.mxu0
        %v513 = vadd.f32 0.0, %v512
        %514 = vmatmul.f32.gmra.mxu0 %v398
        %v515 = vpop.f32.mrf.mxu0
        %v516 = vadd.f32 0.0, %v515
        %517 = vmatmul.f32.gmra.mxu0 %v401
        %v518 = vpop.f32.mrf.mxu0
        %v519 = vadd.f32 0.0, %v518
        %520 = vmatmul.f32.gmra.mxu0 %v404
        %v521 = vpop.f32.mrf.mxu0
        %v522 = vadd.f32 0.0, %v521
        %523 = vmatmul.f32.gmra.mxu0 %v407
        %v524 = vpop.f32.mrf.mxu0
        %v525 = vadd.f32 0.0, %v524
        %526 = vmatmul.f32.gmra.mxu0 %v410
        %v527 = vpop.f32.mrf.mxu0
        %v528 = vadd.f32 0.0, %v527
        %529 = vmatmul.f32.gmra.mxu0 %v413
        %v530 = vpop.f32.mrf.mxu0
        %v531 = vadd.f32 0.0, %v530
        %532 = vmatmul.f32.gmra.mxu0 %v416
        %v533 = vpop.f32.mrf.mxu0
        %v534 = vadd.f32 0.0, %v533
        %535 = vmatmul.f32.gmra.mxu0 %v419
        %v536 = vpop.f32.mrf.mxu0
        %v537 = vadd.f32 0.0, %v536
        %538 = vdwg.mxu0
        %539 = vmatpush.msra.mxu0 0.0
        %540 = vmatpush.msra.mxu0 0.0
        %541 = vmatpush.msra.mxu0 0.0
        %542 = vmatpush.msra.mxu0 0.0
        %543 = vmatpush.msra.mxu0 0.0
        %544 = vmatpush.msra.mxu0 0.0
        %545 = vmatpush.msra.mxu0 0.0
        %546 = vmatpush.msra.mxu0 0.0
        %547 = vmatpush.msra.mxu0 0.0
        %548 = vmatpush.msra.mxu0 0.0
        %549 = vmatpush.msra.mxu0 0.0
        %550 = vmatpush.msra.mxu0 0.0
        %551 = vmatpush.msra.mxu0 0.0
        %552 = vmatpush.msra.mxu0 0.0
        %553 = vmatpush.msra.mxu0 0.0
        %554 = vmatpush.msra.mxu0 %v424
        %555 = vmatmul.f32.gmra.mxu0 %v326
        %v556 = vpop.f32.mrf.mxu0
        %v557 = vadd.f32 0.0, %v556
        %558 = vmatmul.f32.gmra.mxu0 %v329
        %v559 = vpop.f32.mrf.mxu0
        %v560 = vadd.f32 0.0, %v559
        %561 = vmatmul.f32.gmra.mxu0 %v332
        %v562 = vpop.f32.mrf.mxu0
        %v563 = vadd.f32 0.0, %v562
        %564 = vmatmul.f32.gmra.mxu0 %v335
        %v565 = vpop.f32.mrf.mxu0
        %v566 = vadd.f32 0.0, %v565
        %567 = vmatmul.f32.gmra.mxu0 %v338
        %v568 = vpop.f32.mrf.mxu0
        %v569 = vadd.f32 0.0, %v568
        %570 = vmatmul.f32.gmra.mxu0 %v341
        %v571 = vpop.f32.mrf.mxu0
        %v572 = vadd.f32 0.0, %v571
        %573 = vmatmul.f32.gmra.mxu0 %v344
        %v574 = vpop.f32.mrf.mxu0
        %v575 = vadd.f32 0.0, %v574
        %576 = vmatmul.f32.gmra.mxu0 %v347
        %v577 = vpop.f32.mrf.mxu0
        %v578 = vadd.f32 0.0, %v577
        %579 = vmatmul.f32.gmra.mxu0 %v350
        %v580 = vpop.f32.mrf.mxu0
        %v581 = vadd.f32 0.0, %v580
        %582 = vmatmul.f32.gmra.mxu0 %v353
        %v583 = vpop.f32.mrf.mxu0
        %v584 = vadd.f32 0.0, %v583
        %585 = vmatmul.f32.gmra.mxu0 %v356
        %v586 = vpop.f32.mrf.mxu0
        %v587 = vadd.f32 0.0, %v586
        %588 = vmatmul.f32.gmra.mxu0 %v359
        %v589 = vpop.f32.mrf.mxu0
        %v590 = vadd.f32 0.0, %v589
        %591 = vmatmul.f32.gmra.mxu0 %v362
        %v592 = vpop.f32.mrf.mxu0
        %v593 = vadd.f32 0.0, %v592
        %594 = vmatmul.f32.gmra.mxu0 %v365
        %v595 = vpop.f32.mrf.mxu0
        %v596 = vadd.f32 0.0, %v595
        %597 = vmatmul.f32.gmra.mxu0 %v368
        %v598 = vpop.f32.mrf.mxu0
        %v599 = vadd.f32 0.0, %v598
        %600 = vmatmul.f32.gmra.mxu0 %v371
        %v601 = vpop.f32.mrf.mxu0
        %v602 = vadd.f32 0.0, %v601
        %603 = vmatmul.f32.gmra.mxu0 %v374
        %v604 = vpop.f32.mrf.mxu0
        %v605 = vadd.f32 0.0, %v604
        %606 = vmatmul.f32.gmra.mxu0 %v377
        %v607 = vpop.f32.mrf.mxu0
        %v608 = vadd.f32 0.0, %v607
        %609 = vmatmul.f32.gmra.mxu0 %v380
        %v610 = vpop.f32.mrf.mxu0
        %v611 = vadd.f32 0.0, %v610
        %612 = vmatmul.f32.gmra.mxu0 %v383
        %v613 = vpop.f32.mrf.mxu0
        %v614 = vadd.f32 0.0, %v613
        %615 = vmatmul.f32.gmra.mxu0 %v386
        %v616 = vpop.f32.mrf.mxu0
        %v617 = vadd.f32 0.0, %v616
        %618 = vmatmul.f32.gmra.mxu0 %v389
        %v619 = vpop.f32.mrf.mxu0
        %v620 = vadd.f32 0.0, %v619
        %621 = vmatmul.f32.gmra.mxu0 %v392
        %v622 = vpop.f32.mrf.mxu0
        %v623 = vadd.f32 0.0, %v622
        %624 = vmatmul.f32.gmra.mxu0 %v395
        %v625 = vpop.f32.mrf.mxu0
        %v626 = vadd.f32 0.0, %v625
        %627 = vmatmul.f32.gmra.mxu0 %v398
        %v628 = vpop.f32.mrf.mxu0
        %v629 = vadd.f32 0.0, %v628
        %630 = vmatmul.f32.gmra.mxu0 %v401
        %v631 = vpop.f32.mrf.mxu0
        %v632 = vadd.f32 0.0, %v631
        %633 = vmatmul.f32.gmra.mxu0 %v404
        %v634 = vpop.f32.mrf.mxu0
        %v635 = vadd.f32 0.0, %v634
        %636 = vmatmul.f32.gmra.mxu0 %v407
        %v637 = vpop.f32.mrf.mxu0
        %v638 = vadd.f32 0.0, %v637
        %639 = vmatmul.f32.gmra.mxu0 %v410
        %v640 = vpop.f32.mrf.mxu0
        %v641 = vadd.f32 0.0, %v640
        %642 = vmatmul.f32.gmra.mxu0 %v413
        %v643 = vpop.f32.mrf.mxu0
        %v644 = vadd.f32 0.0, %v643
        %645 = vmatmul.f32.gmra.mxu0 %v416
        %v646 = vpop.f32.mrf.mxu0
        %v647 = vadd.f32 0.0, %v646
        %648 = vmatmul.f32.gmra.mxu0 %v419
        %v649 = vpop.f32.mrf.mxu0
        %v650 = vadd.f32 0.0, %v649
        %651 = vdwg.mxu0
        %v652 = vld [vmem:[#allocation2] sm:$0x3]
        %v653 = vmax.f32 %v444, %v450
        %v654 = vmax.f32 %v447, %v453
        %v655 = vmax.f32 %v653, %v456
        %v656 = vmax.f32 %v654, %v459
        %v657 = vmax.f32 %v655, %v462
        %v658 = vmax.f32 %v656, %v465
        %v659 = vmax.f32 %v657, %v468
        %v660 = vmax.f32 %v658, %v471
        %v661 = vmax.f32 %v659, %v474
        %v662 = vmax.f32 %v660, %v477
        %v663 = vmax.f32 %v661, %v480
        %v664 = vmax.f32 %v662, %v483
        %v665 = vmax.f32 %v663, %v486
        %v666 = vmax.f32 %v664, %v489
        %v667 = vmax.f32 %v665, %v492
        %v668 = vmax.f32 %v666, %v495
        %v669 = vmax.f32 %v667, %v498
        %v670 = vmax.f32 %v668, %v501
        %v671 = vmax.f32 %v669, %v504
        %v672 = vmax.f32 %v670, %v507
        %v673 = vmax.f32 %v671, %v510
        %v674 = vmax.f32 %v672, %v513
        %v675 = vmax.f32 %v673, %v516
        %v676 = vmax.f32 %v674, %v519
        %v677 = vmax.f32 %v675, %v522
        %v678 = vmax.f32 %v676, %v525
        %v679 = vmax.f32 %v677, %v528
        %v680 = vmax.f32 %v678, %v531
        %v681 = vmax.f32 %v679, %v534
        %v682 = vmax.f32 %v680, %v537
        %v683 = vmax.f32 %v681, %v682
        %v684 = vrot.slane %v683, 4
        %v685 = vmax.f32 %v683, %v684
        %v686 = vrot.slane %v685, 2
        %v687 = vmax.f32 %v685, %v686
        %v688 = vrot.slane %v687, 1
        %v689 = vmax.f32 %v687, %v688
        %v690 = vmax.f32 %v557, %v563
        %v691 = vmax.f32 %v560, %v566
        %v692 = vmax.f32 %v690, %v569
        %v693 = vmax.f32 %v691, %v572
        %v694 = vmax.f32 %v692, %v575
        %v695 = vmax.f32 %v693, %v578
        %v696 = vmax.f32 %v694, %v581
        %v697 = vmax.f32 %v695, %v584
        %v698 = vmax.f32 %v696, %v587
        %v699 = vmax.f32 %v697, %v590
        %v700 = vmax.f32 %v698, %v593
        %v701 = vmax.f32 %v699, %v596
        %v702 = vmax.f32 %v700, %v599
        %v703 = vmax.f32 %v701, %v602
        %v704 = vmax.f32 %v702, %v605
        %v705 = vmax.f32 %v703, %v608
        %v706 = vmax.f32 %v704, %v611
        %v707 = vmax.f32 %v705, %v614
        %v708 = vmax.f32 %v706, %v617
        %v709 = vmax.f32 %v707, %v620
        %v710 = vmax.f32 %v708, %v623
        %v711 = vmax.f32 %v709, %v626
        %v712 = vmax.f32 %v710, %v629
        %v713 = vmax.f32 %v711, %v632
        %v714 = vmax.f32 %v712, %v635
        %v715 = vmax.f32 %v713, %v638
        %v716 = vmax.f32 %v714, %v641
        %v717 = vmax.f32 %v715, %v644
        %v718 = vmax.f32 %v716, %v647
        %v719 = vmax.f32 %v717, %v650
        %v720 = vmax.f32 %v718, %v719
        %v721 = vrot.slane %v720, 4
        %v722 = vmax.f32 %v720, %v721
        %v723 = vrot.slane %v722, 2
        %v724 = vmax.f32 %v722, %v723
        %v725 = vrot.slane %v724, 1
        %v726 = vmax.f32 %v724, %v725
        %v729 = vrot.slane %v726, 7
        %vm730 = vcmask 1040384
        %v731 = vsel %vm730, %v689, %v729
        %v733 = vmax.f32 %v652, %v731
        %v734 = vsub.f32 %v652, %v733
        %v735 = vmul.f32 %v734, 1.442695
        %v736 = vpow.pop %v735
        %v738 = vperm.slane %v733, 0
        %v739 = vperm.slane %v733, 1
        %v742 = vsub.f32 %v444, %v738
        %v743 = vsub.f32 %v557, %v739
        %v744 = vsub.f32 %v447, %v738
        %v745 = vsub.f32 %v560, %v739
        %v746 = vsub.f32 %v450, %v738
        %v747 = vsub.f32 %v563, %v739
        %v748 = vsub.f32 %v453, %v738
        %v749 = vsub.f32 %v566, %v739
        %v750 = vsub.f32 %v456, %v738
        %v751 = vsub.f32 %v569, %v739
        %v752 = vsub.f32 %v459, %v738
        %v753 = vsub.f32 %v572, %v739
        %v754 = vsub.f32 %v462, %v738
        %v755 = vsub.f32 %v575, %v739
        %v756 = vsub.f32 %v465, %v738
        %v757 = vsub.f32 %v578, %v739
        %v758 = vsub.f32 %v468, %v738
        %v759 = vsub.f32 %v581, %v739
        %v760 = vsub.f32 %v471, %v738
        %v761 = vsub.f32 %v584, %v739
        %v762 = vsub.f32 %v474, %v738
        %v763 = vsub.f32 %v587, %v739
        %v764 = vsub.f32 %v477, %v738
        %v765 = vsub.f32 %v590, %v739
        %v766 = vsub.f32 %v480, %v738
        %v767 = vsub.f32 %v593, %v739
        %v768 = vsub.f32 %v483, %v738
        %v769 = vsub.f32 %v596, %v739
        %v770 = vsub.f32 %v486, %v738
        %v771 = vsub.f32 %v599, %v739
        %v772 = vsub.f32 %v489, %v738
        %v773 = vsub.f32 %v602, %v739
        %v774 = vsub.f32 %v492, %v738
        %v775 = vsub.f32 %v605, %v739
        %v776 = vsub.f32 %v495, %v738
        %v777 = vsub.f32 %v608, %v739
        %v778 = vsub.f32 %v498, %v738
        %v779 = vsub.f32 %v611, %v739
        %v780 = vsub.f32 %v501, %v738
        %v781 = vsub.f32 %v614, %v739
        %v782 = vsub.f32 %v504, %v738
        %v783 = vsub.f32 %v617, %v739
        %v784 = vsub.f32 %v507, %v738
        %v785 = vsub.f32 %v620, %v739
        %v786 = vsub.f32 %v510, %v738
        %v787 = vsub.f32 %v623, %v739
        %v788 = vsub.f32 %v513, %v738
        %v789 = vsub.f32 %v626, %v739
        %v790 = vsub.f32 %v516, %v738
        %v791 = vsub.f32 %v629, %v739
        %v792 = vsub.f32 %v519, %v738
        %v793 = vsub.f32 %v632, %v739
        %v794 = vsub.f32 %v522, %v738
        %v795 = vsub.f32 %v635, %v739
        %v796 = vsub.f32 %v525, %v738
        %v797 = vsub.f32 %v638, %v739
        %v798 = vsub.f32 %v528, %v738
        %v799 = vsub.f32 %v641, %v739
        %v800 = vsub.f32 %v531, %v738
        %v801 = vsub.f32 %v644, %v739
        %v802 = vsub.f32 %v534, %v738
        %v803 = vsub.f32 %v647, %v739
        %v804 = vsub.f32 %v537, %v738
        %v805 = vsub.f32 %v650, %v739
        %v806 = vmul.f32 %v742, 1.442695
        %v807 = vpow.pop %v806
        %v808 = vmul.f32 %v743, 1.442695
        %v809 = vpow.pop %v808
        %v810 = vmul.f32 %v744, 1.442695
        %v811 = vpow.pop %v810
        %v812 = vmul.f32 %v745, 1.442695
        %v813 = vpow.pop %v812
        %v814 = vmul.f32 %v746, 1.442695
        %v815 = vpow.pop %v814
        %v816 = vmul.f32 %v747, 1.442695
        %v817 = vpow.pop %v816
        %v818 = vmul.f32 %v748, 1.442695
        %v819 = vpow.pop %v818
        %v820 = vmul.f32 %v749, 1.442695
        %v821 = vpow.pop %v820
        %v822 = vmul.f32 %v750, 1.442695
        %v823 = vpow.pop %v822
        %v824 = vmul.f32 %v751, 1.442695
        %v825 = vpow.pop %v824
        %v826 = vmul.f32 %v752, 1.442695
        %v827 = vpow.pop %v826
        %v828 = vmul.f32 %v753, 1.442695
        %v829 = vpow.pop %v828
        %v830 = vmul.f32 %v754, 1.442695
        %v831 = vpow.pop %v830
        %v832 = vmul.f32 %v755, 1.442695
        %v833 = vpow.pop %v832
        %v834 = vmul.f32 %v756, 1.442695
        %v835 = vpow.pop %v834
        %v836 = vmul.f32 %v757, 1.442695
        %v837 = vpow.pop %v836
        %v838 = vmul.f32 %v758, 1.442695
        %v839 = vpow.pop %v838
        %v840 = vmul.f32 %v759, 1.442695
        %v841 = vpow.pop %v840
        %v842 = vmul.f32 %v760, 1.442695
        %v843 = vpow.pop %v842
        %v844 = vmul.f32 %v761, 1.442695
        %v845 = vpow.pop %v844
        %v846 = vmul.f32 %v762, 1.442695
        %v847 = vpow.pop %v846
        %v848 = vmul.f32 %v763, 1.442695
        %v849 = vpow.pop %v848
        %v850 = vmul.f32 %v764, 1.442695
        %v851 = vpow.pop %v850
        %v852 = vmul.f32 %v765, 1.442695
        %v853 = vpow.pop %v852
        %v854 = vmul.f32 %v766, 1.442695
        %v855 = vpow.pop %v854
        %v856 = vmul.f32 %v767, 1.442695
        %v857 = vpow.pop %v856
        %v858 = vmul.f32 %v768, 1.442695
        %v859 = vpow.pop %v858
        %v860 = vmul.f32 %v769, 1.442695
        %v861 = vpow.pop %v860
        %v862 = vmul.f32 %v770, 1.442695
        %v863 = vpow.pop %v862
        %v864 = vmul.f32 %v771, 1.442695
        %v865 = vpow.pop %v864
        %v866 = vmul.f32 %v772, 1.442695
        %v867 = vpow.pop %v866
        %v868 = vmul.f32 %v773, 1.442695
        %v869 = vpow.pop %v868
        %v870 = vmul.f32 %v774, 1.442695
        %v871 = vpow.pop %v870
        %v872 = vmul.f32 %v775, 1.442695
        %v873 = vpow.pop %v872
        %v874 = vmul.f32 %v776, 1.442695
        %v875 = vpow.pop %v874
        %v876 = vmul.f32 %v777, 1.442695
        %v877 = vpow.pop %v876
        %v878 = vmul.f32 %v778, 1.442695
        %v879 = vpow.pop %v878
        %v880 = vmul.f32 %v779, 1.442695
        %v881 = vpow.pop %v880
        %v882 = vmul.f32 %v780, 1.442695
        %v883 = vpow.pop %v882
        %v884 = vmul.f32 %v781, 1.442695
        %v885 = vpow.pop %v884
        %v886 = vmul.f32 %v782, 1.442695
        %v887 = vpow.pop %v886
        %v888 = vmul.f32 %v783, 1.442695
        %v889 = vpow.pop %v888
        %v890 = vmul.f32 %v784, 1.442695
        %v891 = vpow.pop %v890
        %v892 = vmul.f32 %v785, 1.442695
        %v893 = vpow.pop %v892
        %v894 = vmul.f32 %v786, 1.442695
        %v895 = vpow.pop %v894
        %v896 = vmul.f32 %v787, 1.442695
        %v897 = vpow.pop %v896
        %v898 = vmul.f32 %v788, 1.442695
        %v899 = vpow.pop %v898
        %v900 = vmul.f32 %v789, 1.442695
        %v901 = vpow.pop %v900
        %v902 = vmul.f32 %v790, 1.442695
        %v903 = vpow.pop %v902
        %v904 = vmul.f32 %v791, 1.442695
        %v905 = vpow.pop %v904
        %v906 = vmul.f32 %v792, 1.442695
        %v907 = vpow.pop %v906
        %v908 = vmul.f32 %v793, 1.442695
        %v909 = vpow.pop %v908
        %v910 = vmul.f32 %v794, 1.442695
        %v911 = vpow.pop %v910
        %v912 = vmul.f32 %v795, 1.442695
        %v913 = vpow.pop %v912
        %v914 = vmul.f32 %v796, 1.442695
        %v915 = vpow.pop %v914
        %v916 = vmul.f32 %v797, 1.442695
        %v917 = vpow.pop %v916
        %v918 = vmul.f32 %v798, 1.442695
        %v919 = vpow.pop %v918
        %v920 = vmul.f32 %v799, 1.442695
        %v921 = vpow.pop %v920
        %v922 = vmul.f32 %v800, 1.442695
        %v923 = vpow.pop %v922
        %v924 = vmul.f32 %v801, 1.442695
        %v925 = vpow.pop %v924
        %v926 = vmul.f32 %v802, 1.442695
        %v927 = vpow.pop %v926
        %v928 = vmul.f32 %v803, 1.442695
        %v929 = vpow.pop %v928
        %v930 = vmul.f32 %v804, 1.442695
        %v931 = vpow.pop %v930
        %v932 = vmul.f32 %v805, 1.442695
        %v933 = vpow.pop %v932
        %v934 = vld [vmem:[#allocation3] sm:$0x3]
        %v935 = vmul.f32 %v736, %v934
        %v936 = vadd.f32 %v807, %v811
        %v937 = vadd.f32 %v936, %v815
        %v938 = vadd.f32 %v937, %v819
        %v939 = vadd.f32 %v938, %v823
        %v940 = vadd.f32 %v939, %v827
        %v941 = vadd.f32 %v940, %v831
        %v942 = vadd.f32 %v941, %v835
        %v943 = vadd.f32 %v942, %v839
        %v944 = vadd.f32 %v943, %v843
        %v945 = vadd.f32 %v944, %v847
        %v946 = vadd.f32 %v945, %v851
        %v947 = vadd.f32 %v946, %v855
        %v948 = vadd.f32 %v947, %v859
        %v949 = vadd.f32 %v948, %v863
        %v950 = vadd.f32 %v949, %v867
        %v951 = vadd.f32 %v950, %v871
        %v952 = vadd.f32 %v951, %v875
        %v953 = vadd.f32 %v952, %v879
        %v954 = vadd.f32 %v953, %v883
        %v955 = vadd.f32 %v954, %v887
        %v956 = vadd.f32 %v955, %v891
        %v957 = vadd.f32 %v956, %v895
        %v958 = vadd.f32 %v957, %v899
        %v959 = vadd.f32 %v958, %v903
        %v960 = vadd.f32 %v959, %v907
        %v961 = vadd.f32 %v960, %v911
        %v962 = vadd.f32 %v961, %v915
        %v963 = vadd.f32 %v962, %v919
        %v964 = vadd.f32 %v963, %v923
        %v965 = vadd.f32 %v964, %v927
        %v966 = vadd.f32 %v965, %v931
        %v967 = vrot.slane %v966, 4
        %v968 = vadd.f32 %v966, %v967
        %v969 = vrot.slane %v968, 2
        %v970 = vadd.f32 %v968, %v969
        %v971 = vrot.slane %v970, 1
        %v972 = vadd.f32 %v970, %v971
        %v973 = vadd.f32 %v809, %v813
        %v974 = vadd.f32 %v973, %v817
        %v975 = vadd.f32 %v974, %v821
        %v976 = vadd.f32 %v975, %v825
        %v977 = vadd.f32 %v976, %v829
        %v978 = vadd.f32 %v977, %v833
        %v979 = vadd.f32 %v978, %v837
        %v980 = vadd.f32 %v979, %v841
        %v981 = vadd.f32 %v980, %v845
        %v982 = vadd.f32 %v981, %v849
        %v983 = vadd.f32 %v982, %v853
        %v984 = vadd.f32 %v983, %v857
        %v985 = vadd.f32 %v984, %v861
        %v986 = vadd.f32 %v985, %v865
        %v987 = vadd.f32 %v986, %v869
        %v988 = vadd.f32 %v987, %v873
        %v989 = vadd.f32 %v988, %v877
        %v990 = vadd.f32 %v989, %v881
        %v991 = vadd.f32 %v990, %v885
        %v992 = vadd.f32 %v991, %v889
        %v993 = vadd.f32 %v992, %v893
        %v994 = vadd.f32 %v993, %v897
        %v995 = vadd.f32 %v994, %v901
        %v996 = vadd.f32 %v995, %v905
        %v997 = vadd.f32 %v996, %v909
        %v998 = vadd.f32 %v997, %v913
        %v999 = vadd.f32 %v998, %v917
        %v1000 = vadd.f32 %v999, %v921
        %v1001 = vadd.f32 %v1000, %v925
        %v1002 = vadd.f32 %v1001, %v929
        %v1003 = vadd.f32 %v1002, %v933
        %v1004 = vrot.slane %v1003, 4
        %v1005 = vadd.f32 %v1003, %v1004
        %v1006 = vrot.slane %v1005, 2
        %v1007 = vadd.f32 %v1005, %v1006
        %v1008 = vrot.slane %v1007, 1
        %v1009 = vadd.f32 %v1007, %v1008
        %v1012 = vrot.slane %v1009, 7
        %v1013 = vsel %vm730, %v972, %v1012
        %v1015 = vadd.f32 %v935, %v1013
        %v1016 = vlaneseq
        %vm1017 = vcmp.ge.s32.totalorder %v1016, 0
        %vm1018 = vcmp.lt.s32.totalorder %v1016, 256
        %vm1019 = vmand %vm1017, %vm1018
        %1020 = vst.msk [vmem:[#allocation3] sm:$0x3] %vm1019, %v1015
        %1021 = vst [vmem:[#allocation1] ss:$2 sm:$0xff] %v249
        %v1022 = vld.sshfl [vmem:[#allocation1] sm:$0xff pattern:$0x75316420]
        %v1023 = vld.sshfl [vmem:[#allocation1 + $0x8] sm:$0xff pattern:$0x75316420]
        %1026 = vmatpush.msra.mxu0 %v867
        %1027 = vmatpush.msra.mxu0 %v863
        %1028 = vmatpush.msra.mxu0 %v859
        %1029 = vmatpush.msra.mxu0 %v855
        %1030 = vmatpush.msra.mxu0 %v851
        %1031 = vmatpush.msra.mxu0 %v847
        %1032 = vmatpush.msra.mxu0 %v843
        %1033 = vmatpush.msra.mxu0 %v839
        %1034 = vmatpush.msra.mxu0 %v835
        %1035 = vmatpush.msra.mxu0 %v831
        %1036 = vmatpush.msra.mxu0 %v827
        %1037 = vmatpush.msra.mxu0 %v823
        %1038 = vmatpush.msra.mxu0 %v819
        %1039 = vmatpush.msra.mxu0 %v815
        %1040 = vmatpush.msra.mxu0 %v811
        %1041 = vmatpush.msra.mxu0 %v807
        %1042 = vmatmul.f32.gmra.mxu0 %v1022
        %v1043 = vpop.f32.mrf.mxu0
        %v1044 = vadd.f32 0.0, %v1043
        %1045 = vdwg.mxu0
        %1046 = vmatpush.msra.mxu0 %v931
        %1047 = vmatpush.msra.mxu0 %v927
        %1048 = vmatpush.msra.mxu0 %v923
        %1049 = vmatpush.msra.mxu0 %v919
        %1050 = vmatpush.msra.mxu0 %v915
        %1051 = vmatpush.msra.mxu0 %v911
        %1052 = vmatpush.msra.mxu0 %v907
        %1053 = vmatpush.msra.mxu0 %v903
        %1054 = vmatpush.msra.mxu0 %v899
        %1055 = vmatpush.msra.mxu0 %v895
        %1056 = vmatpush.msra.mxu0 %v891
        %1057 = vmatpush.msra.mxu0 %v887
        %1058 = vmatpush.msra.mxu0 %v883
        %1059 = vmatpush.msra.mxu0 %v879
        %1060 = vmatpush.msra.mxu0 %v875
        %1061 = vmatpush.msra.mxu0 %v871
        %1062 = vmatmul.f32.gmra.mxu0 %v1023
        %v1063 = vpop.f32.mrf.mxu0
        %v1064 = vadd.f32 %v1044, %v1063
        %1065 = vdwg.mxu0
        %1066 = vmatpush.msra.mxu0 %v869
        %1067 = vmatpush.msra.mxu0 %v865
        %1068 = vmatpush.msra.mxu0 %v861
        %1069 = vmatpush.msra.mxu0 %v857
        %1070 = vmatpush.msra.mxu0 %v853
        %1071 = vmatpush.msra.mxu0 %v849
        %1072 = vmatpush.msra.mxu0 %v845
        %1073 = vmatpush.msra.mxu0 %v841
        %1074 = vmatpush.msra.mxu0 %v837
        %1075 = vmatpush.msra.mxu0 %v833
        %1076 = vmatpush.msra.mxu0 %v829
        %1077 = vmatpush.msra.mxu0 %v825
        %1078 = vmatpush.msra.mxu0 %v821
        %1079 = vmatpush.msra.mxu0 %v817
        %1080 = vmatpush.msra.mxu0 %v813
        %1081 = vmatpush.msra.mxu0 %v809
        %1082 = vmatmul.f32.gmra.mxu0 %v1022
        %v1083 = vpop.f32.mrf.mxu0
        %v1084 = vadd.f32 0.0, %v1083
        %1085 = vdwg.mxu0
        %1086 = vmatpush.msra.mxu0 %v933
        %1087 = vmatpush.msra.mxu0 %v929
        %1088 = vmatpush.msra.mxu0 %v925
        %1089 = vmatpush.msra.mxu0 %v921
        %1090 = vmatpush.msra.mxu0 %v917
        %1091 = vmatpush.msra.mxu0 %v913
        %1092 = vmatpush.msra.mxu0 %v909
        %1093 = vmatpush.msra.mxu0 %v905
        %1094 = vmatpush.msra.mxu0 %v901
        %1095 = vmatpush.msra.mxu0 %v897
        %1096 = vmatpush.msra.mxu0 %v893
        %1097 = vmatpush.msra.mxu0 %v889
        %1098 = vmatpush.msra.mxu0 %v885
        %1099 = vmatpush.msra.mxu0 %v881
        %1100 = vmatpush.msra.mxu0 %v877
        %1101 = vmatpush.msra.mxu0 %v873
        %1102 = vmatmul.f32.gmra.mxu0 %v1023
        %v1103 = vpop.f32.mrf.mxu0
        %v1104 = vadd.f32 %v1084, %v1103
        %1105 = vdwg.mxu0
        %v1106 = vld [vmem:[#allocation4] sm:$0xff]
        %v1108 = vperm.slane %v736, 0
        %v1109 = vperm.slane %v736, 1
        %1113 = vst [vmem:[#allocation1] ss:$2 sm:$0xff] %v1106
        %v1114 = vld.sshfl [vmem:[#allocation1] sm:$0xff pattern:$0x75316420]
        %v1115 = vld.sshfl [vmem:[#allocation1 + $0x8] sm:$0xff pattern:$0x75316420]
        %v1118 = vmul.f32 %v1108, %v1114
        %v1119 = vmul.f32 %v1109, %v1115
        %v1120 = vadd.f32 %v1118, %v1064
        %v1121 = vadd.f32 %v1119, %v1104
        %v1124 = vrot.slane %v1121, 4
        %v1125 = vsel %vm421, %v1120, %v1124
        %1127 = vst [vmem:[#allocation4] sm:$0xff] %v1125
        %1128 = vst.msk [vmem:[#allocation2] sm:$0x3] %vm1019, %v733
        // Predicated region
        $region41: #{tpu_custom_call.1} parent=27 // pred_check
          %p1129 = pneg %p234
        $region42: #{tpu_custom_call.1} parent=27 // pred_check_branch
          %1131 = sbr.rel (%p1129) target = $region44
        $region43: #{tpu_custom_call.1} parent=27 // pred_region
          %v1132 = vld [vmem:[#allocation4] sm:$0xff]
          %v1133 = vld [vmem:[#allocation3] sm:$0x3]
          %v1135 = vperm.slane %v1133, 0
          %v1136 = vperm.slane %v1133, 1
          %v1137 = vrot.slane %v1136, 4
          %v1138 = vsel %vm421, %v1135, %v1137
          %v1140 = vrcp.pop %v1138
          %v1141 = vmul.f32 %v1138, %v1140
          %v1142 = vsub.f32 1.0, %v1141
          %v1143 = vmul.f32 %v1140, %v1142
          %v1144 = vadd.f32 %v1140, %v1143
          %vm1145 = vweird.f32 %v1138
          %vm1146 = vweird.f32 %v1140
          %vm1147 = vmor %vm1145, %vm1146
          %v1148 = vsel %vm1147, %v1140, %v1144
          %v1149 = vand.u32 2147483647, %v1138
          %vm1150 = vcmp.eq.f32.partialorder %v1149, 8.507059e+37
          %v1151 = vand.u32 %v1138, 2147483648
          %v1152 = vor.u32 1.1754944e-38, %v1151
          %v1153 = vsel %vm1150, %v1152, %v1148
          %v1154 = vmul.f32 %v1132, %v1153
          %v1155 = vld [vmem:[%s194] sm:$0xff]
          %v1156 = vadd.f32 %v1154, %v1155
          %1157 = vst [vmem:[%s230] sm:$0xff] %v1156
        $region44: #{tpu_custom_call.1} parent=27 // pred_fallthru
          _
        %s1158 = sand.u32 %s107, 1
        %s1159 = scalar_lea.sflag [#allocation8], %s1158
        %s1160 = sand.u32 %s107, 1
        %s1161 = smul.addr %s1160, 8
        %s1162 = scalar_lea.vmem [#allocation11], %s1161
        // Predicated region
        $region45: #{tpu_custom_call.1} parent=27 // pred_check
          %p1163 = pneg %p117
        $region46: #{tpu_custom_call.1} parent=27 // pred_check_branch
          %1165 = sbr.rel (%p1163) target = $region48
        $region47: #{tpu_custom_call.1} parent=27 // pred_region
          %s1166 = smul.u32 2, %s28
          %1168 = vsyncadd %s1159, 0
          %s1169 = smul.addr %s27, 2
          %s1170 = sadd.s32 %s1166, %s1169
          %s1171 = smul.addr %s1170, 4
          %s1172 = scalar_lea.hbm %s2, %s1171
          %s1174 = sshll.u32 %s1162, 4
          %s1175 = int_to_ptr.vmem [resolvable:$true] %s1174
          %s1176 = sshll.u32 %s1172, 4
          %s1177 = int_to_ptr.hbm [resolvable:$true] %s1176
          %1179 = dma.vmem_to_hbm [thread:$0]  %s1175, 128, %s1177, %s1159
        $region48: #{tpu_custom_call.1} parent=27 // pred_fallthru
          _
      $region28: #{tpu_custom_call.1} parent=5 // pred_fallthru
        _
      %p1180 = scmp.le.s32.totalorder 2, %s17
      // Predicated region
      $region49: #{tpu_custom_call.1} parent=5 // pred_check
        %p1181 = pneg %p1180
      $region50: #{tpu_custom_call.1} parent=5 // pred_check_branch
        %1183 = sbr.rel (%p1181) target = $region52
      $region51: #{tpu_custom_call.1} parent=5 // pred_region
        %s1184 = ssub.s32 %s17, 2
        // Predicated region
        $region53: #{tpu_custom_call.1} parent=51 // pred_check
          %p1185 = pneg %p123
        $region54: #{tpu_custom_call.1} parent=51 // pred_check_branch
          %1187 = sbr.rel (%p1185) target = $region56
        $region55: #{tpu_custom_call.1} parent=51 // pred_region
          %s1188 = sand.u32 %s108, 1
          %s1189 = scalar_lea.sflag [#allocation8], %s1188
          %s1190 = sand.u32 %s108, 1
          %s1191 = smul.addr %s1190, 8
          %s1192 = scalar_lea.vmem [#allocation11], %s1191
          %1194 = dma.done %s1189, 128
        $region56: #{tpu_custom_call.1} parent=51 // pred_fallthru
          _
      $region52: #{tpu_custom_call.1} parent=5 // pred_fallthru
        _
    $region6: #{tpu_custom_call.1} parent=1 // loop_footer
      %s21 = sadd.s32 1, %s17
    $region7: #{tpu_custom_call.1} parent=1 // loop_footer_branch
      %16 = sbr.rel target = $region3
    $region8: #{tpu_custom_call.1} parent=1 // loop_exit
      _
    %1195 = vsyncpa [#allocation7], 1
    %s1196 = scalar_lea.sflag [#allocation7], 1
    %1197 = vsyncpa %s1196, 1
    %1198 = vsyncpa [#allocation10], 1
    %s1199 = scalar_lea.sflag [#allocation10], 1
    %1200 = vsyncpa %s1199, 1
    %1201 = vsyncpa [#allocation8], 1
    %s1202 = scalar_lea.sflag [#allocation8], 1
    %1203 = vsyncpa %s1202, 1

</llo_original>
